<compile_context>
chip_gen: v6e
topology: v6e:2x2x1
jax: 0.10.0
libtpu: 0.0.40
codegen_flags: <defaults>
</compile_context>

<pallas_src>
import functools

import jax
import jax.numpy as jnp
from jax import lax
from jax.experimental import pallas as pl
from jax.experimental.pallas import tpu as pltpu


def _triplet_loss_kernel(a_ref, p_ref, n_ref, o_ref, acc_ref, *,
                         margin, batch, tile_rows):
    c = pl.program_id(0)           # partial-sum index (TensorCore on v7x)
    i = pl.program_id(1)           # reduction step within this part
    n_steps = pl.num_programs(1)

    @pl.when(i == 0)
    def _():
        acc_ref[...] = jnp.zeros_like(acc_ref)

    a = a_ref[...]
    # Difference in the input dtype (free for f32; avoids three full-tile f32
    # casts for bf16), widened to f32 for eps / square / reduce.
    eps = jnp.float32(1e-6)        # torch pairwise_distance adds eps to the diff
    diff_p = (a - p_ref[...]).astype(jnp.float32) + eps
    diff_n = (a - n_ref[...]).astype(jnp.float32) + eps
    d_pos = jnp.sqrt(jnp.sum(diff_p * diff_p, axis=-1, keepdims=True))  # (TB, 1)
    d_neg = jnp.sqrt(jnp.sum(diff_n * diff_n, axis=-1, keepdims=True))  # (TB, 1)

    # MarginRankingLoss(d_pos, d_neg, target=1): max(0, -(d_pos - d_neg) + margin)
    per_sample = jnp.maximum(-(d_pos - d_neg) + jnp.float32(margin), 0.0)

    # Mask rows outside the real batch (ragged last tile and, on the multi-TC
    # path, tiles whose DMA was clamped by the index_map).  The mask uses the
    # logical row index so nothing is double counted and the mean stays exact.
    row0 = (c * n_steps + i) * tile_rows
    row_ids = row0 + lax.broadcasted_iota(jnp.int32, per_sample.shape, 0)
    per_sample = jnp.where(row_ids < batch, per_sample, 0.0)

    acc_ref[...] += jnp.sum(per_sample)

    @pl.when(i == n_steps - 1)
    def _():
        # Lane-dense (8,128) block holding this part's partial sum.
        o_ref[...] = jnp.broadcast_to(acc_ref[...], o_ref.shape)


def _vmem_capacity_bytes():
    try:
        return int(pltpu.get_tpu_info().vmem_capacity_bytes)
    except Exception:
        return 64 * 1024 * 1024    # conservative fallback (v7x per-TC VMEM)


def _num_tensorcores():
    # Only v7x exposes two TensorCores per chip that a CORE_PARALLEL axis can
    # shard across; everything else is a single TC.
    try:
        kind = jax.devices()[0].device_kind.lower()
    except Exception:
        return 1
    return 2 if "v7" in kind else 1


def triplet_loss(anchor, positive, negative, margin: float = 1.0):
    assert anchor.shape == positive.shape == negative.shape
    assert anchor.ndim == 2
    B, D = anchor.shape
    dtype_bytes = jnp.dtype(anchor.dtype).itemsize

    # Sublane alignment for the row (second-minor) axis: 8 f32 / 16 bf16 / 32 i8.
    row_align = 8 * max(1, 4 // dtype_bytes)

    n_parts = _num_tensorcores()

    # --- VMEM budgeting, per generation --------------------------------------
    vmem_cap = _vmem_capacity_bytes()                        # 128 MiB v5e/v6e, 64 MiB v7x
    vmem_limit = min(vmem_cap * 3 // 4, 100 * 1024 * 1024)   # ~96 MiB / ~48 MiB
    work_budget = vmem_limit * 2 // 3                        # ~64 MiB / ~32 MiB

    def rows_for(n_buffers):
        # Pipelined input streams plus the in-kernel f32 temporaries
        # (diff_p, diff_n, squares / reduce scratch ≈ 4 f32 copies per row).
        per_row = 3 * n_buffers * D * dtype_bytes + 4 * D * 4
        return (work_budget // per_row // row_align) * row_align

    n_buffers = 2
    tb = min(rows_for(n_buffers), 1024)   # mem-bound roofline saturates ~512-1024 rows
    if tb < 256 and B > max(tb, row_align):
        # Large D forces a small block: deepen the pipeline to hide DMA issue
        # latency and re-derive the tile with the extra buffer accounted for.
        n_buffers = 3
        tb = min(rows_for(n_buffers), 1024)
    tb = max(tb, row_align)
    # TODO(synk): add a D-tiling (second reduction axis over feature chunks)
    # fallback for D so large that even one row_align-row tile overflows VMEM.

    if tb >= B:
        tb = B                           # one block covering the full batch
    num_tiles = int(pl.cdiv(B, tb))
    n_parts = min(n_parts, num_tiles)
    tiles_per_part = int(pl.cdiv(num_tiles, n_parts))

    # Make sure the scoped limit covers what we actually allocate.
    need = tb * (3 * n_buffers * D * dtype_bytes + 4 * D * 4) + (1 << 21)
    vmem_limit = int(max(vmem_limit, min(need, vmem_cap)))

    kernel = functools.partial(
        _triplet_loss_kernel, margin=float(margin), batch=B, tile_rows=tb)

    # Input index_map.  On the multi-part (v7x) path the last part may own
    # logical tile indices past the array; clamp the DMA to the last real tile
    # (the in-kernel row mask zeroes those rows), so no input copy is needed.
    if n_parts == 1:
        in_index = lambda c, i: (i, 0)
    else:
        last_tile = num_tiles - 1
        in_index = lambda c, i: (jnp.minimum(c * tiles_per_part + i, last_tile), 0)

    spec_kwargs = {}
    if n_buffers != 2 and hasattr(pl, "Buffered"):
        spec_kwargs["pipeline_mode"] = pl.Buffered(n_buffers)
    in_spec = pl.BlockSpec((tb, D), in_index, **spec_kwargs)
    out_spec = pl.BlockSpec((8, 128), lambda c, i: (c, 0))

    if n_parts > 1 and hasattr(pltpu, "CORE_PARALLEL"):
        dim_sem = (pltpu.CORE_PARALLEL, pltpu.ARBITRARY)
    elif n_parts > 1:
        dim_sem = ("parallel", "arbitrary")
    else:
        dim_sem = ("arbitrary", "arbitrary")

    bytes_in = 3 * n_parts * tiles_per_part * tb * D * dtype_bytes
    cost = pl.CostEstimate(
        flops=10 * num_tiles * tb * D + 8 * num_tiles * tb,
        transcendentals=2 * num_tiles * tb,
        bytes_accessed=bytes_in + n_parts * 8 * 128 * 4,
    )

    partials = pl.pallas_call(
        kernel,
        out_shape=jax.ShapeDtypeStruct((n_parts * 8, 128), jnp.float32),
        grid_spec=pltpu.PrefetchScalarGridSpec(
            num_scalar_prefetch=0,
            grid=(n_parts, tiles_per_part),
            in_specs=[in_spec, in_spec, in_spec],
            out_specs=out_spec,
            scratch_shapes=[pltpu.VMEM((1, 1), jnp.float32)],
        ),
        compiler_params=pltpu.CompilerParams(
            dimension_semantics=dim_sem,
            vmem_limit_bytes=vmem_limit,
        ),
        cost_estimate=cost,
    )(anchor, positive, negative)

    part_sums = partials[::8, 0]         # one partial sum per part
    return jnp.sum(part_sums) / jnp.float32(B)


def _triplet_loss_ref(anchor, positive, negative, margin: float = 1.0):
    eps = 1e-6
    a = anchor.astype(jnp.float32)
    p = positive.astype(jnp.float32)
    n = negative.astype(jnp.float32)
    d_pos = jnp.sqrt(jnp.sum((a - p + eps) ** 2, axis=-1))
    d_neg = jnp.sqrt(jnp.sum((a - n + eps) ** 2, axis=-1))
    return jnp.mean(jnp.maximum(-(d_pos - d_neg) + margin, 0.0))


if __name__ == "__main__":
    key = jax.random.PRNGKey(0)

    # Case 1: small, aligned batch (embedding dim on the 128-lane axis).
    k_a, k_p, k_n, key = jax.random.split(key, 4)
    B, D = 8, 128
    anchor = jax.random.normal(k_a, (B, D), dtype=jnp.float32)
    positive = jax.random.normal(k_p, (B, D), dtype=jnp.float32)
    negative = jax.random.normal(k_n, (B, D), dtype=jnp.float32)

    loss = triplet_loss(anchor, positive, negative, margin=1.0)
    jax.block_until_ready(loss)
    ref = _triplet_loss_ref(anchor, positive, negative, margin=1.0)
    assert jnp.allclose(loss, ref, rtol=1e-5, atol=1e-5), (loss, ref)

    # Case 2: batch not a multiple of the sublane tiling (exercises the
    # ragged-tile masking path, no padding copies involved).
    k_a, k_p, k_n, key = jax.random.split(key, 4)
    B, D = 37, 256
    anchor = jax.random.normal(k_a, (B, D), dtype=jnp.float32)
    positive = jax.random.normal(k_p, (B, D), dtype=jnp.float32)
    negative = jax.random.normal(k_n, (B, D), dtype=jnp.float32)

    loss = triplet_loss(anchor, positive, negative, margin=1.0)
    jax.block_until_ready(loss)
    ref = _triplet_loss_ref(anchor, positive, negative, margin=1.0)
    assert jnp.allclose(loss, ref, rtol=1e-5, atol=1e-5), (loss, ref)

    print("KERNEL_OK")
</pallas_src>

<mosaic_0001>
module attributes {stable_mosaic.version = 11 : i64} {
  func.func @_triplet_loss_kernel(%arg0: i32, %arg1: i32, %arg2: memref<8x128xf32, #tpu.memory_space<vmem>>, %arg3: memref<8x128xf32, #tpu.memory_space<vmem>>, %arg4: memref<8x128xf32, #tpu.memory_space<vmem>>, %arg5: memref<8x128xf32, #tpu.memory_space<vmem>>, %arg6: memref<1x1xf32, #tpu.memory_space<vmem>>) attributes {dimension_semantics = [#tpu.dimension_semantics<arbitrary>, #tpu.dimension_semantics<arbitrary>], iteration_bounds = array<i64: 1, 1>, scalar_prefetch = 0 : i64, scratch_operands = 1 : i64, tpu.core_type = #tpu.core_type<tc>, window_params = [{transform_indices = @transform_0, window_bounds = array<i64: 8, 128>}, {transform_indices = @transform_1, window_bounds = array<i64: 8, 128>}, {transform_indices = @transform_2, window_bounds = array<i64: 8, 128>}, {transform_indices = @transform_3, window_bounds = array<i64: 8, 128>}]} {
    %c0_i32 = arith.constant 0 : i32
    %0 = arith.cmpi eq, %arg1, %c0_i32 : i32
    %1 = arith.extui %0 : i1 to i32
    %c0_i32_0 = arith.constant 0 : i32
    %2 = arith.cmpi ne, %1, %c0_i32_0 : i32
    scf.if %2 {
      %cst_21 = arith.constant 0.000000e+00 : f32
      %48 = vector.broadcast %cst_21 : f32 to vector<1x1xf32>
      %c0_22 = arith.constant 0 : index
      %c0_23 = arith.constant 0 : index
      %49 = vector.load %arg6[%c0_22, %c0_23] : memref<1x1xf32, #tpu.memory_space<vmem>>, vector<1x1xf32>
      tpu.vector_store %arg6[%c0_22, %c0_23], %48 {strides = array<i32>} : memref<1x1xf32, #tpu.memory_space<vmem>>, vector<1x1xf32>,
    } else {
    }
    %c0 = arith.constant 0 : index
    %c0_1 = arith.constant 0 : index
    %3 = vector.load %arg2[%c0, %c0_1] : memref<8x128xf32, #tpu.memory_space<vmem>>, vector<8x128xf32>
    %c0_2 = arith.constant 0 : index
    %c0_3 = arith.constant 0 : index
    %4 = vector.load %arg3[%c0_2, %c0_3] : memref<8x128xf32, #tpu.memory_space<vmem>>, vector<8x128xf32>
    %5 = arith.subf %3, %4 : vector<8x128xf32>
    %cst = arith.constant 9.99999997E-7 : f32
    %6 = vector.broadcast %cst : f32 to vector<8x128xf32>
    %7 = arith.addf %5, %6 : vector<8x128xf32>
    %c0_4 = arith.constant 0 : index
    %c0_5 = arith.constant 0 : index
    %8 = vector.load %arg4[%c0_4, %c0_5] : memref<8x128xf32, #tpu.memory_space<vmem>>, vector<8x128xf32>
    %9 = arith.subf %3, %8 : vector<8x128xf32>
    %cst_6 = arith.constant 9.99999997E-7 : f32
    %10 = vector.broadcast %cst_6 : f32 to vector<8x128xf32>
    %11 = arith.addf %9, %10 : vector<8x128xf32>
    %12 = arith.mulf %7, %7 : vector<8x128xf32>
    %cst_7 = arith.constant dense<0.000000e+00> : vector<8xf32>
    %13 = vector.multi_reduction <add>, %12, %cst_7 [1] : vector<8x128xf32> to vector<8xf32>
    %14 = vector.shape_cast %13 : vector<8xf32> to vector<8x1xf32>
    %15 = math.sqrt %14 : vector<8x1xf32>
    %16 = arith.mulf %11, %11 : vector<8x128xf32>
    %cst_8 = arith.constant dense<0.000000e+00> : vector<8xf32>
    %17 = vector.multi_reduction <add>, %16, %cst_8 [1] : vector<8x128xf32> to vector<8xf32>
    %18 = vector.shape_cast %17 : vector<8xf32> to vector<8x1xf32>
    %19 = math.sqrt %18 : vector<8x1xf32>
    %20 = arith.subf %15, %19 : vector<8x1xf32>
    %cst_9 = arith.constant 0.000000e+00 : f32
    %21 = vector.broadcast %cst_9 : f32 to vector<8x1xf32>
    %22 = arith.subf %21, %20 : vector<8x1xf32>
    %cst_10 = arith.constant 1.000000e+00 : f32
    %23 = vector.broadcast %cst_10 : f32 to vector<8x1xf32>
    %24 = arith.addf %22, %23 : vector<8x1xf32>
    %cst_11 = arith.constant 0.000000e+00 : f32
    %25 = vector.broadcast %cst_11 : f32 to vector<8x1xf32>
    %26 = arith.maximumf %24, %25 : vector<8x1xf32>
    %c1_i32 = arith.constant 1 : i32
    %27 = arith.muli %arg0, %c1_i32 : i32
    %28 = arith.addi %27, %arg1 : i32
    %c8_i32 = arith.constant 8 : i32
    %29 = arith.muli %28, %c8_i32 : i32
    %30 = tpu.iota {dimensions = array<i32: 0>} : vector<8x1xi32>
    %31 = vector.broadcast %29 : i32 to vector<8x1xi32>
    %32 = arith.addi %31, %30 : vector<8x1xi32>
    %c8_i32_12 = arith.constant 8 : i32
    %33 = vector.broadcast %c8_i32_12 : i32 to vector<8x1xi32>
    %34 = arith.cmpi slt, %32, %33 : vector<8x1xi32>
    %cst_13 = arith.constant 0.000000e+00 : f32
    %35 = vector.broadcast %cst_13 : f32 to vector<8x1xf32>
    %36 = arith.select %34, %26, %35 : vector<8x1xi1>, vector<8x1xf32>
    %c0_14 = arith.constant 0 : index
    %c0_15 = arith.constant 0 : index
    %37 = vector.load %arg6[%c0_14, %c0_15] : memref<1x1xf32, #tpu.memory_space<vmem>>, vector<1x1xf32>
    %38 = vector.shape_cast %36 : vector<8x1xf32> to vector<1x8x1xf32>
    %cst_16 = arith.constant dense<0.000000e+00> : vector<1xf32>
    %39 = vector.multi_reduction <add>, %38, %cst_16 [1, 2] : vector<1x8x1xf32> to vector<1xf32>
    %40 = vector.shape_cast %39 : vector<1xf32> to vector<1x1x1xf32>
    %41 = vector.extract %40[0, 0, 0] : f32 from vector<1x1x1xf32>
    %42 = vector.broadcast %41 : f32 to vector<1x1xf32>
    %43 = arith.addf %37, %42 : vector<1x1xf32>
    %c0_17 = arith.constant 0 : index
    %c0_18 = arith.constant 0 : index
    %44 = vector.load %arg6[%c0_17, %c0_18] : memref<1x1xf32, #tpu.memory_space<vmem>>, vector<1x1xf32>
    tpu.vector_store %arg6[%c0_17, %c0_18], %43 {strides = array<i32>} : memref<1x1xf32, #tpu.memory_space<vmem>>, vector<1x1xf32>,
    %c0_i32_19 = arith.constant 0 : i32
    %45 = arith.cmpi eq, %arg1, %c0_i32_19 : i32
    %46 = arith.extui %45 : i1 to i32
    %c0_i32_20 = arith.constant 0 : i32
    %47 = arith.cmpi ne, %46, %c0_i32_20 : i32
    scf.if %47 {
      %c0_21 = arith.constant 0 : index
      %c0_22 = arith.constant 0 : index
      %48 = vector.load %arg6[%c0_21, %c0_22] : memref<1x1xf32, #tpu.memory_space<vmem>>, vector<1x1xf32>
      %49 = vector.shape_cast %48 : vector<1x1xf32> to vector<1x1xf32>
      %50 = vector.broadcast %49 : vector<1x1xf32> to vector<8x128xf32>
      %c0_23 = arith.constant 0 : index
      %c0_24 = arith.constant 0 : index
      %51 = vector.load %arg5[%c0_23, %c0_24] : memref<8x128xf32, #tpu.memory_space<vmem>>, vector<8x128xf32>
      tpu.vector_store %arg5[%c0_23, %c0_24], %50 {strides = array<i32>} : memref<8x128xf32, #tpu.memory_space<vmem>>, vector<8x128xf32>,
    } else {
    }
    return
  }
  func.func @transform_0(%arg0: i32, %arg1: i32) -> (i32, i32) {
    %c0_i32 = arith.constant 0 : i32
    %c0_i32_0 = arith.constant 0 : i32
    return %arg1, %c0_i32 : i32, i32
  }
  func.func @transform_1(%arg0: i32, %arg1: i32) -> (i32, i32) {
    %c0_i32 = arith.constant 0 : i32
    %c0_i32_0 = arith.constant 0 : i32
    return %arg1, %c0_i32 : i32, i32
  }
  func.func @transform_2(%arg0: i32, %arg1: i32) -> (i32, i32) {
    %c0_i32 = arith.constant 0 : i32
    %c0_i32_0 = arith.constant 0 : i32
    return %arg1, %c0_i32 : i32, i32
  }
  func.func @transform_3(%arg0: i32, %arg1: i32) -> (i32, i32) {
    %c0_i32 = arith.constant 0 : i32
    %c0_i32_0 = arith.constant 0 : i32
    return %arg0, %c0_i32 : i32, i32
  }
}

</mosaic_0001>

<llo_original>
// kernel: tpu_custom_call.1
$region0: #{tpu_custom_call.1}
  #allocation0 [shape = 'u32[]', space=smem, size = 0x4, offset = 0x4, fixed_abs, tag = 'smem constant byte address 0x4 - core index']
  #allocation1 [shape = 'u32[144,128]{1,0:T(1,128)}', space=vmem, size = 0x12000, scoped, tag = 'internal scratch']
  #allocation2 [shape = 'f32[1,1]{1,0:T(1,128)}', space=vmem, size = 0x200, scoped, tag = 'scratch operand']
  %s0 = inlined_call_operand.hbm [shape: f32[8,128], index: 0, kind: input, shape index: {}]
  %s1 = inlined_call_operand.hbm [shape: f32[8,128], index: 1, kind: input, shape index: {}]
  %s2 = inlined_call_operand.hbm [shape: f32[8,128], index: 2, kind: input, shape index: {}]
  %s3 = inlined_call_operand.hbm [shape: f32[8,128], index: 3, kind: output, shape index: {}]
  %s4 = sld [smem:[#allocation0]]
  $region42: #{tpu_custom_call.1} parent=0
    _
  %s6 = ssub.s32 1, %s4
  %s7 = scalar_select 0, %s6, %s4
  $region1: #{tpu_custom_call.1} parent=0
    #allocation3 [shape = 'u8[4096]{0}', space=vmem, size = 0x1000, scoped, tag = 'input window, operand 0, single buffered']
    #allocation4 [shape = 's32[1]{0}', space=sflag, size = 0x4, scoped, tag = 'scoped memory for tpu_custom_call.1']
    #allocation5 [shape = 's32[1]{0}', space=sflag, size = 0x4, scoped, tag = 'scoped memory for tpu_custom_call.1']
    #allocation6 [shape = 'u8[4096]{0}', space=vmem, size = 0x1000, scoped, tag = 'input window, operand 1, single buffered']
    #allocation7 [shape = 's32[1]{0}', space=sflag, size = 0x4, scoped, tag = 'scoped memory for tpu_custom_call.1']
    #allocation8 [shape = 'u8[4096]{0}', space=vmem, size = 0x1000, scoped, tag = 'input window, operand 2, single buffered']
    #allocation9 [shape = 'u8[4096]{0}', space=vmem, size = 0x1000, scoped, tag = 'output window, operand 0, single buffered']
    %8 = vsyncpa [#allocation4], 0
    %9 = vsyncpa [#allocation7], 0
    %10 = vsyncpa [#allocation5], 0
    // Predicated region
    $region2: #{tpu_custom_call.1} parent=1 // pred_check
      _
    $region3: #{tpu_custom_call.1} parent=1 // pred_check_branch
      %12 = sbr.rel (0) target = $region5
    $region4: #{tpu_custom_call.1} parent=1 // pred_region
      %s14 = ssub.s32 128, 128
      %15 = vsyncadd [#allocation4], %s14
      %s17 = sshll.u32 [#allocation3], 4
      %s18 = int_to_ptr.vmem [resolvable:$true] %s17
      %20 = dma.hbm_to_vmem [thread:$0]  %s0, 128, %s18, [#allocation4]
    $region5: #{tpu_custom_call.1} parent=1 // pred_fallthru
      _
    // Predicated region
    $region6: #{tpu_custom_call.1} parent=1 // pred_check
      _
    $region7: #{tpu_custom_call.1} parent=1 // pred_check_branch
      %22 = sbr.rel (0) target = $region9
    $region8: #{tpu_custom_call.1} parent=1 // pred_region
      %s24 = ssub.s32 128, 128
      %25 = vsyncadd [#allocation7], %s24
      %s27 = sshll.u32 [#allocation6], 4
      %s28 = int_to_ptr.vmem [resolvable:$true] %s27
      %30 = dma.hbm_to_vmem [thread:$0]  %s1, 128, %s28, [#allocation7]
    $region9: #{tpu_custom_call.1} parent=1 // pred_fallthru
      _
    // Predicated region
    $region10: #{tpu_custom_call.1} parent=1 // pred_check
      _
    $region11: #{tpu_custom_call.1} parent=1 // pred_check_branch
      %32 = sbr.rel (0) target = $region13
    $region12: #{tpu_custom_call.1} parent=1 // pred_region
      %s34 = ssub.s32 128, 128
      %35 = vsyncadd [#allocation7], %s34
      %s37 = sshll.u32 [#allocation8], 4
      %s38 = int_to_ptr.vmem [resolvable:$true] %s37
      %40 = dma.hbm_to_vmem [thread:$0]  %s2, 128, %s38, [#allocation7]
    $region13: #{tpu_custom_call.1} parent=1 // pred_fallthru
      _
    // Predicated region
    $region14: #{tpu_custom_call.1} parent=1 // pred_check
      _
    $region15: #{tpu_custom_call.1} parent=1 // pred_check_branch
      %42 = sbr.rel (0) target = $region17
    $region16: #{tpu_custom_call.1} parent=1 // pred_region
      %43 = dma.done [#allocation4], 128
    $region17: #{tpu_custom_call.1} parent=1 // pred_fallthru
      _
    // Predicated region
    $region18: #{tpu_custom_call.1} parent=1 // pred_check
      _
    $region19: #{tpu_custom_call.1} parent=1 // pred_check_branch
      %45 = sbr.rel (0) target = $region21
    $region20: #{tpu_custom_call.1} parent=1 // pred_region
      %46 = dma.done [#allocation7], 128
    $region21: #{tpu_custom_call.1} parent=1 // pred_fallthru
      _
    // Predicated region
    $region22: #{tpu_custom_call.1} parent=1 // pred_check
      _
    $region23: #{tpu_custom_call.1} parent=1 // pred_check_branch
      %48 = sbr.rel (0) target = $region25
    $region24: #{tpu_custom_call.1} parent=1 // pred_region
      %49 = dma.done [#allocation7], 128
    $region25: #{tpu_custom_call.1} parent=1 // pred_fallthru
      _
    %p50 = scmp.eq.s32.totalorder 0, 0
    // Predicated region
    $region26: #{tpu_custom_call.1} parent=1 // pred_check
      %p51 = pneg %p50
    $region27: #{tpu_custom_call.1} parent=1 // pred_check_branch
      %53 = sbr.rel (%p51) target = $region29
    $region28: #{tpu_custom_call.1} parent=1 // pred_region
      %vm54 = vcmask 0
      %55 = vst.msk [vmem:[#allocation2] sm:$0x1] %vm54, 0.0
    $region29: #{tpu_custom_call.1} parent=1 // pred_fallthru
      _
    %v56 = vld [vmem:[#allocation3] sm:$0xff]
    %v57 = vld [vmem:[#allocation6] sm:$0xff]
    %v58 = vsub.f32 %v56, %v57
    %v59 = vadd.f32 %v58, 1e-06
    %v60 = vld [vmem:[#allocation8] sm:$0xff]
    %v61 = vsub.f32 %v56, %v60
    %v62 = vadd.f32 %v61, 1e-06
    %v63 = vmul.f32 %v59, %v59
    %64 = vadd.xlane.f32.xlu0 %v63
    %v65 = vpop.xlane.xlu0 %64
    %v66 = vrsqrt.pop %v65
    %v67 = vmul.f32 %v65, %v66
    %vm68 = vcmp.eq.f32.partialorder %v65, inf
    %v69 = vsel %vm68, %v65, %v67
    %vm70 = vcmp.eq.f32.partialorder %v65, 0.0
    %v71 = vand.u32 %v65, 2147483648
    %v72 = vsel %vm70, %v71, %v69
    %v73 = vmul.f32 %v62, %v62
    %74 = vadd.xlane.f32.xlu0 %v73
    %v75 = vpop.xlane.xlu0 %74
    %v76 = vrsqrt.pop %v75
    %v77 = vmul.f32 %v75, %v76
    %vm78 = vcmp.eq.f32.partialorder %v75, inf
    %v79 = vsel %vm78, %v75, %v77
    %vm80 = vcmp.eq.f32.partialorder %v75, 0.0
    %v81 = vand.u32 %v75, 2147483648
    %v82 = vsel %vm80, %v81, %v79
    %v83 = vsub.f32 %v72, %v82
    %v84 = vsub.f32 0.0, %v83
    %v85 = vadd.f32 %v84, 1.0
    %v86 = vmax.f32 %v85, 0.0
    %s87 = sadd.s32 0, 0
    %s88 = smul.u32 %s87, 8
    %v89 = vlaneseq
    %v90 = vshrl.u32 %v89, 7
    %v91 = vstv %s88
    %v92 = vadd.s32 %v91, %v90
    %vm93 = vcmp.lt.s32.totalorder %v92, 8
    %v94 = vsel %vm93, %v86, 0.0
    %v95 = vld [vmem:[#allocation2] sm:$0x1]
    %vm96 = vcmask 7168
    %v97 = vsel %vm96, %v94, 0.0
    %98 = vadd.xlane.f32.xlu0 %v97
    %v99 = vpop.xlane.xlu0 %98
    %v100 = vrot.slane %v99, 4
    %v101 = vadd.f32 %v99, %v100
    %v102 = vrot.slane %v101, 2
    %v103 = vadd.f32 %v101, %v102
    %v104 = vrot.slane %v103, 1
    %v105 = vadd.f32 %v103, %v104
    %s106 = vtos %v105
    %v107 = vstv %s106
    %v108 = vadd.f32 %v95, %v107
    %vm109 = vcmask 0
    %110 = vst.msk [vmem:[#allocation2] sm:$0x1] %vm109, %v108
    // Predicated region
    $region30: #{tpu_custom_call.1} parent=1 // pred_check
      %p111 = pneg %p50
    $region31: #{tpu_custom_call.1} parent=1 // pred_check_branch
      %113 = sbr.rel (%p111) target = $region33
    $region32: #{tpu_custom_call.1} parent=1 // pred_region
      %v114 = vld [vmem:[#allocation2] sm:$0x1]
      %v116 = vlaneseq
      %v117 = vshrl.u32 %v116, 7
      %v118 = vsub.s32 0, %v117
      %v119 = vrot.slane %v114, %v118
      %120 = vset.pattern.permute.xlu0 0
      %121 = vperm.xlu0 %120, %v119
      %v122 = vpop.permute.xlu0 %121
      %124 = vst [vmem:[#allocation9] sm:$0xff] %v122
    $region33: #{tpu_custom_call.1} parent=1 // pred_fallthru
      _
    // Predicated region
    $region34: #{tpu_custom_call.1} parent=1 // pred_check
      _
    $region35: #{tpu_custom_call.1} parent=1 // pred_check_branch
      %126 = sbr.rel (0) target = $region37
    $region36: #{tpu_custom_call.1} parent=1 // pred_region
      %s128 = ssub.s32 128, 128
      %129 = vsyncadd [#allocation5], %s128
      %s131 = sshll.u32 [#allocation9], 4
      %s132 = int_to_ptr.vmem [resolvable:$true] %s131
      %134 = dma.vmem_to_hbm [thread:$0]  %s132, 128, %s3, [#allocation5]
    $region37: #{tpu_custom_call.1} parent=1 // pred_fallthru
      _
    // Predicated region
    $region38: #{tpu_custom_call.1} parent=1 // pred_check
      _
    $region39: #{tpu_custom_call.1} parent=1 // pred_check_branch
      %136 = sbr.rel (0) target = $region41
    $region40: #{tpu_custom_call.1} parent=1 // pred_region
      %137 = dma.done [#allocation5], 128
    $region41: #{tpu_custom_call.1} parent=1 // pred_fallthru
      _
    %138 = vsyncpa [#allocation4], 1
    %139 = vsyncpa [#allocation7], 1
    %140 = vsyncpa [#allocation5], 1

</llo_original>
